<compile_context>
chip_gen: v6e
topology: v6e:2x2x1
jax: 0.10.0
libtpu: 0.0.40
codegen_flags: <defaults>
</compile_context>

<pallas_src>
import functools

import jax
import jax.numpy as jnp
from jax import lax
from jax.experimental import pallas as pl
from jax.experimental.pallas import tpu as pltpu

TEMPERATURE = 0.1
# weights (all 1.0, matching the module defaults)
V_D_W = A_D_W = VA_D_W = 1.0
V_G_W = A_G_W = VA_G_W = 1.0
_D_WEIGHTS = (V_D_W, A_D_W, VA_D_W)
_G_WEIGHTS = (V_G_W, A_G_W, VA_G_W)
_EPS = 1e-12  # F.normalize eps


def _loss_kernel(v_ref, a_ref, va_ref, d_ref, g_ref, out_ref, *, temperature):
    inv_t = jnp.float32(1.0 / temperature)

    v = v_ref[...].astype(jnp.float32)
    a = a_ref[...].astype(jnp.float32)
    va = va_ref[...].astype(jnp.float32)
    d = d_ref[...].astype(jnp.float32)

    b = v.shape[0]
    t_tokens = g_ref.shape[0]  # genres is (T, B, D): token axis leading

    # genres_global_feature: token-axis sum via unrolled dense VPU adds
    # (mean's 1/T scale cancels under the L2 normalization below)
    g_sum = g_ref[0].astype(jnp.float32)
    for t in range(1, t_tokens):
        g_sum = g_sum + g_ref[t].astype(jnp.float32)

    # ---- one fused L2 normalization over the stacked (5B, D) block ----------
    stack = jnp.concatenate([v, a, va, d, g_sum], axis=0)          # (5B, D)
    sq = jnp.sum(stack * stack, axis=-1, keepdims=True)
    # x / max(||x||, eps) == x * rsqrt(max(||x||^2, eps^2))
    stack_n = stack * lax.rsqrt(jnp.maximum(sq, _EPS * _EPS))

    lhs = stack_n[0 : 3 * b] * inv_t   # queries [v; a; va], 1/T folded in  (3B, D)
    rhs = stack_n[3 * b : 5 * b]       # targets [description; genres]      (2B, D)
    dn = rhs[0:b]                      # sublane-aligned slices (free)
    gn = rhs[b : 2 * b]

    # ---- one fused MXU matmul for all six similarity blocks -----------------
    sim = lax.dot_general(
        lhs, rhs,
        dimension_numbers=(((1,), (1,)), ((), ())),
        preferred_element_type=jnp.float32,
    )                                                               # (3B, 2B)

    # single global max + single exp; |sim| <= 1/temperature so the shift is safe
    m = jnp.max(sim)
    e = jnp.exp(sim - m)

    # lane mask separating description cols [0, B) from genre cols [B, 2B):
    # avoids lane-offset slicing at column B and subtraction cancellation.
    col_is_desc = lax.broadcasted_iota(jnp.int32, (3 * b, 2 * b), 1) < b
    zeros2d = jnp.zeros_like(e)
    row_sum_d = jnp.sum(jnp.where(col_is_desc, e, zeros2d), axis=1, keepdims=True)
    row_sum_g = jnp.sum(jnp.where(col_is_desc, zeros2d, e), axis=1, keepdims=True)
    lse_row_d = m + jnp.log(row_sum_d)                              # (3B, 1)
    lse_row_g = m + jnp.log(row_sum_g)                              # (3B, 1)

    # positive-pair logits: two (3B, D) mul + lane-reduce (inv_t already in lhs)
    diag_d = jnp.sum(lhs * jnp.concatenate([dn, dn, dn], axis=0),
                     axis=-1, keepdims=True)                        # (3B, 1)
    diag_g = jnp.sum(lhs * jnp.concatenate([gn, gn, gn], axis=0),
                     axis=-1, keepdims=True)                        # (3B, 1)

    col_is_desc_1 = lax.broadcasted_iota(jnp.int32, (1, 2 * b), 1) < b
    zeros1d = jnp.zeros((1, 2 * b), jnp.float32)

    inv_b = jnp.float32(1.0 / b)
    total = jnp.float32(0.0)
    for qi in range(3):                      # sublane-aligned query-block slices
        lo, hi = qi * b, (qi + 1) * b
        # CE(sim_block, labels): mean over rows of (lse_row - diag)
        row_d = jnp.sum(lse_row_d[lo:hi])
        row_g = jnp.sum(lse_row_g[lo:hi])
        # CE(sim_block.T, labels): per-column LSE over this query block's rows
        col_sum = jnp.sum(e[lo:hi, :], axis=0, keepdims=True)       # (1, 2B)
        lse_col = m + jnp.log(col_sum)
        col_d = jnp.sum(jnp.where(col_is_desc_1, lse_col, zeros1d))
        col_g = jnp.sum(jnp.where(col_is_desc_1, zeros1d, lse_col))
        pos_d = jnp.sum(diag_d[lo:hi])
        pos_g = jnp.sum(diag_g[lo:hi])
        total = total + jnp.float32(_D_WEIGHTS[qi]) * inv_b * (row_d + col_d - 2.0 * pos_d)
        total = total + jnp.float32(_G_WEIGHTS[qi]) * inv_b * (row_g + col_g - 2.0 * pos_g)

    out_ref[0, 0] = total


def description_with_genres_contrastive_loss(
    visual, audio, va_fusion, description, genres, temperature=TEMPERATURE
):
    # token-leading genres layout for the kernel: (B, T, D) -> (T, B, D)
    genres_t = jnp.transpose(genres, (1, 0, 2))
    kernel = functools.partial(_loss_kernel, temperature=temperature)
    vmem_spec = pl.BlockSpec(memory_space=pltpu.MemorySpace.VMEM)
    out = pl.pallas_call(
        kernel,
        out_shape=jax.ShapeDtypeStruct((1, 1), jnp.float32),
        in_specs=[vmem_spec] * 5,
        out_specs=pl.BlockSpec(memory_space=pltpu.MemorySpace.SMEM),
        compiler_params=pltpu.CompilerParams(vmem_limit_bytes=32 * 1024 * 1024),
    )(visual, audio, va_fusion, description, genres_t)
    return out[0, 0]


def _reference_loss(visual, audio, va_fusion, description, genres, temperature=TEMPERATURE):
    """Pure-JAX reference mirroring the PyTorch module."""

    def normalize(x):
        n = jnp.linalg.norm(x, axis=1, keepdims=True)
        return x / jnp.maximum(n, _EPS)

    def infonce(f1, f2):
        f1 = normalize(f1)
        f2 = normalize(f2)
        sim = (f1 @ f2.T) / temperature
        b = sim.shape[0]
        lse = jax.scipy.special.logsumexp(sim, axis=1)
        diag = sim[jnp.arange(b), jnp.arange(b)]
        return jnp.mean(lse - diag)

    def bilateral(f1, f2):
        return infonce(f1, f2) + infonce(f2, f1)

    g_mean = jnp.mean(genres, axis=1)
    d_loss = (
        V_D_W * bilateral(visual, description)
        + A_D_W * bilateral(audio, description)
        + VA_D_W * bilateral(va_fusion, description)
    )
    g_loss = (
        V_G_W * bilateral(visual, g_mean)
        + A_G_W * bilateral(audio, g_mean)
        + VA_G_W * bilateral(va_fusion, g_mean)
    )
    return d_loss + g_loss


if __name__ == "__main__":
    B, T, D = 8, 4, 32  # batch, genre tokens, feature dim
    key = jax.random.PRNGKey(0)
    kv, ka, kva, kd, kg = jax.random.split(key, 5)
    visual = jax.random.normal(kv, (B, D), dtype=jnp.float32)
    audio = jax.random.normal(ka, (B, D), dtype=jnp.float32)
    va_fusion = jax.random.normal(kva, (B, D), dtype=jnp.float32)
    description = jax.random.normal(kd, (B, D), dtype=jnp.float32)
    genres = jax.random.normal(kg, (B, T, D), dtype=jnp.float32)

    loss = description_with_genres_contrastive_loss(
        visual, audio, va_fusion, description, genres
    )
    jax.block_until_ready(loss)

    ref = _reference_loss(visual, audio, va_fusion, description, genres)
    assert jnp.allclose(loss, ref, rtol=1e-4, atol=1e-4), (loss, ref)

    print("KERNEL_OK")
</pallas_src>

<mosaic_0001>
module attributes {stable_mosaic.version = 11 : i64} {
  func.func @_loss_kernel(%arg0: memref<8x32xf32, #tpu.memory_space<vmem>>, %arg1: memref<8x32xf32, #tpu.memory_space<vmem>>, %arg2: memref<8x32xf32, #tpu.memory_space<vmem>>, %arg3: memref<8x32xf32, #tpu.memory_space<vmem>>, %arg4: memref<4x8x32xf32, #tpu.memory_space<vmem>>, %arg5: memref<1x1xf32, #tpu.memory_space<smem>>) attributes {dimension_semantics = [], scalar_prefetch = 0 : i64, scratch_operands = 0 : i64, tpu.core_type = #tpu.core_type<tc>} {
    %c0 = arith.constant 0 : index
    %c0_0 = arith.constant 0 : index
    %0 = vector.load %arg0[%c0, %c0_0] : memref<8x32xf32, #tpu.memory_space<vmem>>, vector<8x32xf32>
    %c0_1 = arith.constant 0 : index
    %c0_2 = arith.constant 0 : index
    %1 = vector.load %arg1[%c0_1, %c0_2] : memref<8x32xf32, #tpu.memory_space<vmem>>, vector<8x32xf32>
    %c0_3 = arith.constant 0 : index
    %c0_4 = arith.constant 0 : index
    %2 = vector.load %arg2[%c0_3, %c0_4] : memref<8x32xf32, #tpu.memory_space<vmem>>, vector<8x32xf32>
    %c0_5 = arith.constant 0 : index
    %c0_6 = arith.constant 0 : index
    %3 = vector.load %arg3[%c0_5, %c0_6] : memref<8x32xf32, #tpu.memory_space<vmem>>, vector<8x32xf32>
    %c0_7 = arith.constant 0 : index
    %c0_8 = arith.constant 0 : index
    %c0_9 = arith.constant 0 : index
    %4 = vector.load %arg4[%c0_7, %c0_8, %c0_9] : memref<4x8x32xf32, #tpu.memory_space<vmem>>, vector<1x8x32xf32>
    %5 = vector.shape_cast %4 : vector<1x8x32xf32> to vector<8x32xf32>
    %c1 = arith.constant 1 : index
    %c0_10 = arith.constant 0 : index
    %c0_11 = arith.constant 0 : index
    %6 = vector.load %arg4[%c1, %c0_10, %c0_11] : memref<4x8x32xf32, #tpu.memory_space<vmem>>, vector<1x8x32xf32>
    %7 = vector.shape_cast %6 : vector<1x8x32xf32> to vector<8x32xf32>
    %8 = arith.addf %5, %7 : vector<8x32xf32>
    %c2 = arith.constant 2 : index
    %c0_12 = arith.constant 0 : index
    %c0_13 = arith.constant 0 : index
    %9 = vector.load %arg4[%c2, %c0_12, %c0_13] : memref<4x8x32xf32, #tpu.memory_space<vmem>>, vector<1x8x32xf32>
    %10 = vector.shape_cast %9 : vector<1x8x32xf32> to vector<8x32xf32>
    %11 = arith.addf %8, %10 : vector<8x32xf32>
    %c3 = arith.constant 3 : index
    %c0_14 = arith.constant 0 : index
    %c0_15 = arith.constant 0 : index
    %12 = vector.load %arg4[%c3, %c0_14, %c0_15] : memref<4x8x32xf32, #tpu.memory_space<vmem>>, vector<1x8x32xf32>
    %13 = vector.shape_cast %12 : vector<1x8x32xf32> to vector<8x32xf32>
    %14 = arith.addf %11, %13 : vector<8x32xf32>
    %15 = tpu.concatenate %0, %1, %2, %3, %14 in 0 : vector<8x32xf32>, vector<8x32xf32>, vector<8x32xf32>, vector<8x32xf32>, vector<8x32xf32> -> vector<40x32xf32>
    %16 = arith.mulf %15, %15 : vector<40x32xf32>
    %cst = arith.constant dense<0.000000e+00> : vector<40xf32>
    %17 = vector.multi_reduction <add>, %16, %cst [1] : vector<40x32xf32> to vector<40xf32>
    %18 = vector.shape_cast %17 : vector<40xf32> to vector<40x1xf32>
    %cst_16 = arith.constant 1.000000e-24 : f32
    %19 = vector.broadcast %cst_16 : f32 to vector<40x1xf32>
    %20 = arith.maximumf %18, %19 : vector<40x1xf32>
    %21 = math.rsqrt %20 : vector<40x1xf32>
    %22 = vector.broadcast %21 : vector<40x1xf32> to vector<40x32xf32>
    %23 = arith.mulf %15, %22 : vector<40x32xf32>
    %24 = vector.extract_strided_slice %23 {offsets = [0, 0], sizes = [24, 32], strides = [1, 1]} : vector<40x32xf32> to vector<24x32xf32>
    %cst_17 = arith.constant 1.000000e+01 : f32
    %25 = vector.broadcast %cst_17 : f32 to vector<24x32xf32>
    %26 = arith.mulf %24, %25 : vector<24x32xf32>
    %27 = vector.extract_strided_slice %23 {offsets = [24, 0], sizes = [16, 32], strides = [1, 1]} : vector<40x32xf32> to vector<16x32xf32>
    %28 = vector.extract_strided_slice %27 {offsets = [0, 0], sizes = [8, 32], strides = [1, 1]} : vector<16x32xf32> to vector<8x32xf32>
    %29 = vector.extract_strided_slice %27 {offsets = [8, 0], sizes = [8, 32], strides = [1, 1]} : vector<16x32xf32> to vector<8x32xf32>
    %cst_18 = arith.constant dense<0.000000e+00> : vector<24x16xf32>
    %30 = tpu.matmul %26, %27, %cst_18 {dimension_numbers = #tpu.dot_dimension_numbers<[1], [1], [0], [0], [0, 0, 1, 0], [], []>} : vector<24x32xf32>, vector<16x32xf32>, vector<24x16xf32> -> vector<24x16xf32>
    %31 = vector.shape_cast %30 : vector<24x16xf32> to vector<1x24x16xf32>
    %cst_19 = arith.constant dense<0xFF800000> : vector<1xf32>
    %32 = vector.multi_reduction <maximumf>, %31, %cst_19 [1, 2] : vector<1x24x16xf32> to vector<1xf32>
    %33 = vector.shape_cast %32 : vector<1xf32> to vector<1x1x1xf32>
    %34 = vector.extract %33[0, 0, 0] : f32 from vector<1x1x1xf32>
    %35 = vector.broadcast %34 : f32 to vector<24x16xf32>
    %36 = arith.subf %30, %35 : vector<24x16xf32>
    %37 = math.exp %36 : vector<24x16xf32>
    %38 = tpu.iota {dimensions = array<i32: 1>} : vector<24x16xi32>
    %c8_i32 = arith.constant 8 : i32
    %39 = vector.broadcast %c8_i32 : i32 to vector<24x16xi32>
    %40 = arith.cmpi slt, %38, %39 : vector<24x16xi32>
    %cst_20 = arith.constant 0.000000e+00 : f32
    %41 = vector.broadcast %cst_20 : f32 to vector<24x16xf32>
    %42 = arith.select %40, %37, %41 : vector<24x16xi1>, vector<24x16xf32>
    %cst_21 = arith.constant dense<0.000000e+00> : vector<24xf32>
    %43 = vector.multi_reduction <add>, %42, %cst_21 [1] : vector<24x16xf32> to vector<24xf32>
    %44 = vector.shape_cast %43 : vector<24xf32> to vector<24x1xf32>
    %45 = arith.select %40, %41, %37 : vector<24x16xi1>, vector<24x16xf32>
    %cst_22 = arith.constant dense<0.000000e+00> : vector<24xf32>
    %46 = vector.multi_reduction <add>, %45, %cst_22 [1] : vector<24x16xf32> to vector<24xf32>
    %47 = vector.shape_cast %46 : vector<24xf32> to vector<24x1xf32>
    %48 = math.log %44 : vector<24x1xf32>
    %49 = vector.broadcast %34 : f32 to vector<24x1xf32>
    %50 = arith.addf %49, %48 : vector<24x1xf32>
    %51 = math.log %47 : vector<24x1xf32>
    %52 = vector.broadcast %34 : f32 to vector<24x1xf32>
    %53 = arith.addf %52, %51 : vector<24x1xf32>
    %54 = tpu.concatenate %28, %28, %28 in 0 : vector<8x32xf32>, vector<8x32xf32>, vector<8x32xf32> -> vector<24x32xf32>
    %55 = arith.mulf %26, %54 : vector<24x32xf32>
    %cst_23 = arith.constant dense<0.000000e+00> : vector<24xf32>
    %56 = vector.multi_reduction <add>, %55, %cst_23 [1] : vector<24x32xf32> to vector<24xf32>
    %57 = vector.shape_cast %56 : vector<24xf32> to vector<24x1xf32>
    %58 = tpu.concatenate %29, %29, %29 in 0 : vector<8x32xf32>, vector<8x32xf32>, vector<8x32xf32> -> vector<24x32xf32>
    %59 = arith.mulf %26, %58 : vector<24x32xf32>
    %cst_24 = arith.constant dense<0.000000e+00> : vector<24xf32>
    %60 = vector.multi_reduction <add>, %59, %cst_24 [1] : vector<24x32xf32> to vector<24xf32>
    %61 = vector.shape_cast %60 : vector<24xf32> to vector<24x1xf32>
    %62 = tpu.iota {dimensions = array<i32: 1>} : vector<1x16xi32>
    %c8_i32_25 = arith.constant 8 : i32
    %63 = vector.broadcast %c8_i32_25 : i32 to vector<1x16xi32>
    %64 = arith.cmpi slt, %62, %63 : vector<1x16xi32>
    %cst_26 = arith.constant 0.000000e+00 : f32
    %65 = vector.broadcast %cst_26 : f32 to vector<1x16xf32>
    %66 = vector.extract_strided_slice %50 {offsets = [0, 0], sizes = [8, 1], strides = [1, 1]} : vector<24x1xf32> to vector<8x1xf32>
    %67 = vector.shape_cast %66 : vector<8x1xf32> to vector<1x8x1xf32>
    %cst_27 = arith.constant dense<0.000000e+00> : vector<1xf32>
    %68 = vector.multi_reduction <add>, %67, %cst_27 [1, 2] : vector<1x8x1xf32> to vector<1xf32>
    %69 = vector.shape_cast %68 : vector<1xf32> to vector<1x1x1xf32>
    %70 = vector.extract %69[0, 0, 0] : f32 from vector<1x1x1xf32>
    %71 = vector.extract_strided_slice %53 {offsets = [0, 0], sizes = [8, 1], strides = [1, 1]} : vector<24x1xf32> to vector<8x1xf32>
    %72 = vector.shape_cast %71 : vector<8x1xf32> to vector<1x8x1xf32>
    %cst_28 = arith.constant dense<0.000000e+00> : vector<1xf32>
    %73 = vector.multi_reduction <add>, %72, %cst_28 [1, 2] : vector<1x8x1xf32> to vector<1xf32>
    %74 = vector.shape_cast %73 : vector<1xf32> to vector<1x1x1xf32>
    %75 = vector.extract %74[0, 0, 0] : f32 from vector<1x1x1xf32>
    %76 = vector.extract_strided_slice %37 {offsets = [0, 0], sizes = [8, 16], strides = [1, 1]} : vector<24x16xf32> to vector<8x16xf32>
    %cst_29 = arith.constant dense<0.000000e+00> : vector<16xf32>
    %77 = vector.multi_reduction <add>, %76, %cst_29 [0] : vector<8x16xf32> to vector<16xf32>
    %78 = vector.shape_cast %77 : vector<16xf32> to vector<1x16xf32>
    %79 = math.log %78 : vector<1x16xf32>
    %80 = vector.broadcast %34 : f32 to vector<1x16xf32>
    %81 = arith.addf %80, %79 : vector<1x16xf32>
    %82 = arith.select %64, %81, %65 : vector<1x16xi1>, vector<1x16xf32>
    %83 = vector.shape_cast %82 : vector<1x16xf32> to vector<1x1x16xf32>
    %cst_30 = arith.constant dense<0.000000e+00> : vector<1xf32>
    %84 = vector.multi_reduction <add>, %83, %cst_30 [1, 2] : vector<1x1x16xf32> to vector<1xf32>
    %85 = vector.shape_cast %84 : vector<1xf32> to vector<1x1x1xf32>
    %86 = vector.extract %85[0, 0, 0] : f32 from vector<1x1x1xf32>
    %87 = arith.select %64, %65, %81 : vector<1x16xi1>, vector<1x16xf32>
    %88 = vector.shape_cast %87 : vector<1x16xf32> to vector<1x1x16xf32>
    %cst_31 = arith.constant dense<0.000000e+00> : vector<1xf32>
    %89 = vector.multi_reduction <add>, %88, %cst_31 [1, 2] : vector<1x1x16xf32> to vector<1xf32>
    %90 = vector.shape_cast %89 : vector<1xf32> to vector<1x1x1xf32>
    %91 = vector.extract %90[0, 0, 0] : f32 from vector<1x1x1xf32>
    %92 = vector.extract_strided_slice %57 {offsets = [0, 0], sizes = [8, 1], strides = [1, 1]} : vector<24x1xf32> to vector<8x1xf32>
    %93 = vector.shape_cast %92 : vector<8x1xf32> to vector<1x8x1xf32>
    %cst_32 = arith.constant dense<0.000000e+00> : vector<1xf32>
    %94 = vector.multi_reduction <add>, %93, %cst_32 [1, 2] : vector<1x8x1xf32> to vector<1xf32>
    %95 = vector.shape_cast %94 : vector<1xf32> to vector<1x1x1xf32>
    %96 = vector.extract %95[0, 0, 0] : f32 from vector<1x1x1xf32>
    %97 = vector.extract_strided_slice %61 {offsets = [0, 0], sizes = [8, 1], strides = [1, 1]} : vector<24x1xf32> to vector<8x1xf32>
    %98 = vector.shape_cast %97 : vector<8x1xf32> to vector<1x8x1xf32>
    %cst_33 = arith.constant dense<0.000000e+00> : vector<1xf32>
    %99 = vector.multi_reduction <add>, %98, %cst_33 [1, 2] : vector<1x8x1xf32> to vector<1xf32>
    %100 = vector.shape_cast %99 : vector<1xf32> to vector<1x1x1xf32>
    %101 = vector.extract %100[0, 0, 0] : f32 from vector<1x1x1xf32>
    %cst_34 = arith.constant 1.000000e+00 : f32
    %cst_35 = arith.constant 1.250000e-01 : f32
    %102 = arith.mulf %cst_34, %cst_35 : f32
    %103 = arith.addf %70, %86 : f32
    %cst_36 = arith.constant 2.000000e+00 : f32
    %104 = arith.mulf %cst_36, %96 : f32
    %105 = arith.subf %103, %104 : f32
    %106 = arith.mulf %102, %105 : f32
    %cst_37 = arith.constant 0.000000e+00 : f32
    %107 = arith.addf %cst_37, %106 : f32
    %cst_38 = arith.constant 1.000000e+00 : f32
    %cst_39 = arith.constant 1.250000e-01 : f32
    %108 = arith.mulf %cst_38, %cst_39 : f32
    %109 = arith.addf %75, %91 : f32
    %cst_40 = arith.constant 2.000000e+00 : f32
    %110 = arith.mulf %cst_40, %101 : f32
    %111 = arith.subf %109, %110 : f32
    %112 = arith.mulf %108, %111 : f32
    %113 = arith.addf %107, %112 : f32
    %114 = vector.extract_strided_slice %50 {offsets = [8, 0], sizes = [8, 1], strides = [1, 1]} : vector<24x1xf32> to vector<8x1xf32>
    %115 = vector.shape_cast %114 : vector<8x1xf32> to vector<1x8x1xf32>
    %cst_41 = arith.constant dense<0.000000e+00> : vector<1xf32>
    %116 = vector.multi_reduction <add>, %115, %cst_41 [1, 2] : vector<1x8x1xf32> to vector<1xf32>
    %117 = vector.shape_cast %116 : vector<1xf32> to vector<1x1x1xf32>
    %118 = vector.extract %117[0, 0, 0] : f32 from vector<1x1x1xf32>
    %119 = vector.extract_strided_slice %53 {offsets = [8, 0], sizes = [8, 1], strides = [1, 1]} : vector<24x1xf32> to vector<8x1xf32>
    %120 = vector.shape_cast %119 : vector<8x1xf32> to vector<1x8x1xf32>
    %cst_42 = arith.constant dense<0.000000e+00> : vector<1xf32>
    %121 = vector.multi_reduction <add>, %120, %cst_42 [1, 2] : vector<1x8x1xf32> to vector<1xf32>
    %122 = vector.shape_cast %121 : vector<1xf32> to vector<1x1x1xf32>
    %123 = vector.extract %122[0, 0, 0] : f32 from vector<1x1x1xf32>
    %124 = vector.extract_strided_slice %37 {offsets = [8, 0], sizes = [8, 16], strides = [1, 1]} : vector<24x16xf32> to vector<8x16xf32>
    %cst_43 = arith.constant dense<0.000000e+00> : vector<16xf32>
    %125 = vector.multi_reduction <add>, %124, %cst_43 [0] : vector<8x16xf32> to vector<16xf32>
    %126 = vector.shape_cast %125 : vector<16xf32> to vector<1x16xf32>
    %127 = math.log %126 : vector<1x16xf32>
    %128 = vector.broadcast %34 : f32 to vector<1x16xf32>
    %129 = arith.addf %128, %127 : vector<1x16xf32>
    %130 = arith.select %64, %129, %65 : vector<1x16xi1>, vector<1x16xf32>
    %131 = vector.shape_cast %130 : vector<1x16xf32> to vector<1x1x16xf32>
    %cst_44 = arith.constant dense<0.000000e+00> : vector<1xf32>
    %132 = vector.multi_reduction <add>, %131, %cst_44 [1, 2] : vector<1x1x16xf32> to vector<1xf32>
    %133 = vector.shape_cast %132 : vector<1xf32> to vector<1x1x1xf32>
    %134 = vector.extract %133[0, 0, 0] : f32 from vector<1x1x1xf32>
    %135 = arith.select %64, %65, %129 : vector<1x16xi1>, vector<1x16xf32>
    %136 = vector.shape_cast %135 : vector<1x16xf32> to vector<1x1x16xf32>
    %cst_45 = arith.constant dense<0.000000e+00> : vector<1xf32>
    %137 = vector.multi_reduction <add>, %136, %cst_45 [1, 2] : vector<1x1x16xf32> to vector<1xf32>
    %138 = vector.shape_cast %137 : vector<1xf32> to vector<1x1x1xf32>
    %139 = vector.extract %138[0, 0, 0] : f32 from vector<1x1x1xf32>
    %140 = vector.extract_strided_slice %57 {offsets = [8, 0], sizes = [8, 1], strides = [1, 1]} : vector<24x1xf32> to vector<8x1xf32>
    %141 = vector.shape_cast %140 : vector<8x1xf32> to vector<1x8x1xf32>
    %cst_46 = arith.constant dense<0.000000e+00> : vector<1xf32>
    %142 = vector.multi_reduction <add>, %141, %cst_46 [1, 2] : vector<1x8x1xf32> to vector<1xf32>
    %143 = vector.shape_cast %142 : vector<1xf32> to vector<1x1x1xf32>
    %144 = vector.extract %143[0, 0, 0] : f32 from vector<1x1x1xf32>
    %145 = vector.extract_strided_slice %61 {offsets = [8, 0], sizes = [8, 1], strides = [1, 1]} : vector<24x1xf32> to vector<8x1xf32>
    %146 = vector.shape_cast %145 : vector<8x1xf32> to vector<1x8x1xf32>
    %cst_47 = arith.constant dense<0.000000e+00> : vector<1xf32>
    %147 = vector.multi_reduction <add>, %146, %cst_47 [1, 2] : vector<1x8x1xf32> to vector<1xf32>
    %148 = vector.shape_cast %147 : vector<1xf32> to vector<1x1x1xf32>
    %149 = vector.extract %148[0, 0, 0] : f32 from vector<1x1x1xf32>
    %cst_48 = arith.constant 1.000000e+00 : f32
    %cst_49 = arith.constant 1.250000e-01 : f32
    %150 = arith.mulf %cst_48, %cst_49 : f32
    %151 = arith.addf %118, %134 : f32
    %cst_50 = arith.constant 2.000000e+00 : f32
    %152 = arith.mulf %cst_50, %144 : f32
    %153 = arith.subf %151, %152 : f32
    %154 = arith.mulf %150, %153 : f32
    %155 = arith.addf %113, %154 : f32
    %cst_51 = arith.constant 1.000000e+00 : f32
    %cst_52 = arith.constant 1.250000e-01 : f32
    %156 = arith.mulf %cst_51, %cst_52 : f32
    %157 = arith.addf %123, %139 : f32
    %cst_53 = arith.constant 2.000000e+00 : f32
    %158 = arith.mulf %cst_53, %149 : f32
    %159 = arith.subf %157, %158 : f32
    %160 = arith.mulf %156, %159 : f32
    %161 = arith.addf %155, %160 : f32
    %162 = vector.extract_strided_slice %50 {offsets = [16, 0], sizes = [8, 1], strides = [1, 1]} : vector<24x1xf32> to vector<8x1xf32>
    %163 = vector.shape_cast %162 : vector<8x1xf32> to vector<1x8x1xf32>
    %cst_54 = arith.constant dense<0.000000e+00> : vector<1xf32>
    %164 = vector.multi_reduction <add>, %163, %cst_54 [1, 2] : vector<1x8x1xf32> to vector<1xf32>
    %165 = vector.shape_cast %164 : vector<1xf32> to vector<1x1x1xf32>
    %166 = vector.extract %165[0, 0, 0] : f32 from vector<1x1x1xf32>
    %167 = vector.extract_strided_slice %53 {offsets = [16, 0], sizes = [8, 1], strides = [1, 1]} : vector<24x1xf32> to vector<8x1xf32>
    %168 = vector.shape_cast %167 : vector<8x1xf32> to vector<1x8x1xf32>
    %cst_55 = arith.constant dense<0.000000e+00> : vector<1xf32>
    %169 = vector.multi_reduction <add>, %168, %cst_55 [1, 2] : vector<1x8x1xf32> to vector<1xf32>
    %170 = vector.shape_cast %169 : vector<1xf32> to vector<1x1x1xf32>
    %171 = vector.extract %170[0, 0, 0] : f32 from vector<1x1x1xf32>
    %172 = vector.extract_strided_slice %37 {offsets = [16, 0], sizes = [8, 16], strides = [1, 1]} : vector<24x16xf32> to vector<8x16xf32>
    %cst_56 = arith.constant dense<0.000000e+00> : vector<16xf32>
    %173 = vector.multi_reduction <add>, %172, %cst_56 [0] : vector<8x16xf32> to vector<16xf32>
    %174 = vector.shape_cast %173 : vector<16xf32> to vector<1x16xf32>
    %175 = math.log %174 : vector<1x16xf32>
    %176 = vector.broadcast %34 : f32 to vector<1x16xf32>
    %177 = arith.addf %176, %175 : vector<1x16xf32>
    %178 = arith.select %64, %177, %65 : vector<1x16xi1>, vector<1x16xf32>
    %179 = vector.shape_cast %178 : vector<1x16xf32> to vector<1x1x16xf32>
    %cst_57 = arith.constant dense<0.000000e+00> : vector<1xf32>
    %180 = vector.multi_reduction <add>, %179, %cst_57 [1, 2] : vector<1x1x16xf32> to vector<1xf32>
    %181 = vector.shape_cast %180 : vector<1xf32> to vector<1x1x1xf32>
    %182 = vector.extract %181[0, 0, 0] : f32 from vector<1x1x1xf32>
    %183 = arith.select %64, %65, %177 : vector<1x16xi1>, vector<1x16xf32>
    %184 = vector.shape_cast %183 : vector<1x16xf32> to vector<1x1x16xf32>
    %cst_58 = arith.constant dense<0.000000e+00> : vector<1xf32>
    %185 = vector.multi_reduction <add>, %184, %cst_58 [1, 2] : vector<1x1x16xf32> to vector<1xf32>
    %186 = vector.shape_cast %185 : vector<1xf32> to vector<1x1x1xf32>
    %187 = vector.extract %186[0, 0, 0] : f32 from vector<1x1x1xf32>
    %188 = vector.extract_strided_slice %57 {offsets = [16, 0], sizes = [8, 1], strides = [1, 1]} : vector<24x1xf32> to vector<8x1xf32>
    %189 = vector.shape_cast %188 : vector<8x1xf32> to vector<1x8x1xf32>
    %cst_59 = arith.constant dense<0.000000e+00> : vector<1xf32>
    %190 = vector.multi_reduction <add>, %189, %cst_59 [1, 2] : vector<1x8x1xf32> to vector<1xf32>
    %191 = vector.shape_cast %190 : vector<1xf32> to vector<1x1x1xf32>
    %192 = vector.extract %191[0, 0, 0] : f32 from vector<1x1x1xf32>
    %193 = vector.extract_strided_slice %61 {offsets = [16, 0], sizes = [8, 1], strides = [1, 1]} : vector<24x1xf32> to vector<8x1xf32>
    %194 = vector.shape_cast %193 : vector<8x1xf32> to vector<1x8x1xf32>
    %cst_60 = arith.constant dense<0.000000e+00> : vector<1xf32>
    %195 = vector.multi_reduction <add>, %194, %cst_60 [1, 2] : vector<1x8x1xf32> to vector<1xf32>
    %196 = vector.shape_cast %195 : vector<1xf32> to vector<1x1x1xf32>
    %197 = vector.extract %196[0, 0, 0] : f32 from vector<1x1x1xf32>
    %cst_61 = arith.constant 1.000000e+00 : f32
    %cst_62 = arith.constant 1.250000e-01 : f32
    %198 = arith.mulf %cst_61, %cst_62 : f32
    %199 = arith.addf %166, %182 : f32
    %cst_63 = arith.constant 2.000000e+00 : f32
    %200 = arith.mulf %cst_63, %192 : f32
    %201 = arith.subf %199, %200 : f32
    %202 = arith.mulf %198, %201 : f32
    %203 = arith.addf %161, %202 : f32
    %cst_64 = arith.constant 1.000000e+00 : f32
    %cst_65 = arith.constant 1.250000e-01 : f32
    %204 = arith.mulf %cst_64, %cst_65 : f32
    %205 = arith.addf %171, %187 : f32
    %cst_66 = arith.constant 2.000000e+00 : f32
    %206 = arith.mulf %cst_66, %197 : f32
    %207 = arith.subf %205, %206 : f32
    %208 = arith.mulf %204, %207 : f32
    %209 = arith.addf %203, %208 : f32
    %c0_67 = arith.constant 0 : index
    %c0_68 = arith.constant 0 : index
    %210 = memref.load %arg5[%c0_67, %c0_68] : memref<1x1xf32, #tpu.memory_space<smem>>
    memref.store %209, %arg5[%c0_67, %c0_68] : memref<1x1xf32, #tpu.memory_space<smem>>
    return
  }
}

</mosaic_0001>

<llo_original>
// kernel: tpu_custom_call.1
$region0: #{tpu_custom_call.1}
  #allocation0 [shape = 'u32[]', space=smem, size = 0x4, offset = 0x4, fixed_abs, tag = 'smem constant byte address 0x4 - core index']
  #allocation1 [shape = 'u32[144,128]{1,0:T(1,128)}', space=vmem, size = 0x12000, scoped, tag = 'internal scratch']
  %s0 = inlined_call_operand.hbm [shape: f32[8,32], index: 0, kind: input, shape index: {}]
  %s1 = inlined_call_operand.hbm [shape: f32[8,32], index: 1, kind: input, shape index: {}]
  %s2 = inlined_call_operand.hbm [shape: f32[8,32], index: 2, kind: input, shape index: {}]
  %s3 = inlined_call_operand.hbm [shape: f32[8,32], index: 3, kind: input, shape index: {}]
  %s4 = inlined_call_operand.hbm [shape: f32[4,8,32], index: 4, kind: input, shape index: {}]
  %s5 = inlined_call_operand.hbm [shape: f32[1,1], index: 5, kind: output, shape index: {}]
  %s6 = sld [smem:[#allocation0]]
  $region50: #{tpu_custom_call.1} parent=0
    _
  %s8 = ssub.s32 1, %s6
  %s9 = scalar_select 0, %s8, %s6
  $region1: #{tpu_custom_call.1} parent=0
    #allocation2 [shape = 'u8[4096]{0}', space=vmem, size = 0x1000, scoped, tag = 'input window, operand 0, single buffered']
    #allocation3 [shape = 's32[1]{0}', space=sflag, size = 0x4, scoped, tag = 'scoped memory for tpu_custom_call.1']
    #allocation4 [shape = 's32[1]{0}', space=sflag, size = 0x4, scoped, tag = 'scoped memory for tpu_custom_call.1']
    #allocation5 [shape = 'u8[4096]{0}', space=vmem, size = 0x1000, scoped, tag = 'input window, operand 1, single buffered']
    #allocation6 [shape = 's32[1]{0}', space=sflag, size = 0x4, scoped, tag = 'scoped memory for tpu_custom_call.1']
    #allocation7 [shape = 'u8[4096]{0}', space=vmem, size = 0x1000, scoped, tag = 'input window, operand 2, single buffered']
    #allocation8 [shape = 'u8[4096]{0}', space=vmem, size = 0x1000, scoped, tag = 'input window, operand 3, single buffered']
    #allocation9 [shape = 's32[1]{0}', space=sflag, size = 0x4, scoped, tag = 'scoped memory for tpu_custom_call.1']
    #allocation10 [shape = 'u8[16384]{0}', space=vmem, size = 0x4000, scoped, tag = 'input window, operand 4, single buffered']
    #allocation11 [shape = 'u8[512]{0}', space=smem, size = 0x200, scoped, tag = 'output window, operand 0, single buffered']
    %10 = vsyncpa [#allocation3], 0
    %11 = vsyncpa [#allocation6], 0
    %12 = vsyncpa [#allocation9], 0
    %13 = vsyncpa [#allocation4], 0
    // Predicated region
    $region2: #{tpu_custom_call.1} parent=1 // pred_check
      _
    $region3: #{tpu_custom_call.1} parent=1 // pred_check_branch
      %15 = sbr.rel (0) target = $region5
    $region4: #{tpu_custom_call.1} parent=1 // pred_region
      %s17 = ssub.s32 128, 128
      %18 = vsyncadd [#allocation3], %s17
      %s20 = sshll.u32 [#allocation2], 4
      %s21 = int_to_ptr.vmem [resolvable:$true] %s20
      %23 = dma.hbm_to_vmem [thread:$0]  %s0, 128, %s21, [#allocation3]
    $region5: #{tpu_custom_call.1} parent=1 // pred_fallthru
      _
    // Predicated region
    $region6: #{tpu_custom_call.1} parent=1 // pred_check
      _
    $region7: #{tpu_custom_call.1} parent=1 // pred_check_branch
      %25 = sbr.rel (0) target = $region9
    $region8: #{tpu_custom_call.1} parent=1 // pred_region
      %s27 = ssub.s32 128, 128
      %28 = vsyncadd [#allocation6], %s27
      %s30 = sshll.u32 [#allocation5], 4
      %s31 = int_to_ptr.vmem [resolvable:$true] %s30
      %33 = dma.hbm_to_vmem [thread:$0]  %s1, 128, %s31, [#allocation6]
    $region9: #{tpu_custom_call.1} parent=1 // pred_fallthru
      _
    // Predicated region
    $region10: #{tpu_custom_call.1} parent=1 // pred_check
      _
    $region11: #{tpu_custom_call.1} parent=1 // pred_check_branch
      %35 = sbr.rel (0) target = $region13
    $region12: #{tpu_custom_call.1} parent=1 // pred_region
      %s37 = ssub.s32 128, 128
      %38 = vsyncadd [#allocation6], %s37
      %s40 = sshll.u32 [#allocation7], 4
      %s41 = int_to_ptr.vmem [resolvable:$true] %s40
      %43 = dma.hbm_to_vmem [thread:$0]  %s2, 128, %s41, [#allocation6]
    $region13: #{tpu_custom_call.1} parent=1 // pred_fallthru
      _
    // Predicated region
    $region14: #{tpu_custom_call.1} parent=1 // pred_check
      _
    $region15: #{tpu_custom_call.1} parent=1 // pred_check_branch
      %45 = sbr.rel (0) target = $region17
    $region16: #{tpu_custom_call.1} parent=1 // pred_region
      %s47 = ssub.s32 128, 128
      %48 = vsyncadd [#allocation9], %s47
      %s50 = sshll.u32 [#allocation8], 4
      %s51 = int_to_ptr.vmem [resolvable:$true] %s50
      %53 = dma.hbm_to_vmem [thread:$0]  %s3, 128, %s51, [#allocation9]
    $region17: #{tpu_custom_call.1} parent=1 // pred_fallthru
      _
    // Predicated region
    $region18: #{tpu_custom_call.1} parent=1 // pred_check
      _
    $region19: #{tpu_custom_call.1} parent=1 // pred_check_branch
      %55 = sbr.rel (0) target = $region21
    $region20: #{tpu_custom_call.1} parent=1 // pred_region
      %s57 = ssub.s32 512, 512
      %58 = vsyncadd [#allocation9], %s57
      %s59 = sshll.u32 [#allocation10], 4
      %s60 = int_to_ptr.vmem [resolvable:$true] %s59
      %65 = dma.hbm_to_vmem [thread:$0]  %s4, 512, %s60, [#allocation9], 128, 128, 8
    $region21: #{tpu_custom_call.1} parent=1 // pred_fallthru
      _
    // Predicated region
    $region22: #{tpu_custom_call.1} parent=1 // pred_check
      _
    $region23: #{tpu_custom_call.1} parent=1 // pred_check_branch
      %67 = sbr.rel (0) target = $region25
    $region24: #{tpu_custom_call.1} parent=1 // pred_region
      %68 = dma.done [#allocation3], 128
    $region25: #{tpu_custom_call.1} parent=1 // pred_fallthru
      _
    // Predicated region
    $region26: #{tpu_custom_call.1} parent=1 // pred_check
      _
    $region27: #{tpu_custom_call.1} parent=1 // pred_check_branch
      %70 = sbr.rel (0) target = $region29
    $region28: #{tpu_custom_call.1} parent=1 // pred_region
      %71 = dma.done [#allocation6], 128
    $region29: #{tpu_custom_call.1} parent=1 // pred_fallthru
      _
    // Predicated region
    $region30: #{tpu_custom_call.1} parent=1 // pred_check
      _
    $region31: #{tpu_custom_call.1} parent=1 // pred_check_branch
      %73 = sbr.rel (0) target = $region33
    $region32: #{tpu_custom_call.1} parent=1 // pred_region
      %74 = dma.done [#allocation6], 128
    $region33: #{tpu_custom_call.1} parent=1 // pred_fallthru
      _
    // Predicated region
    $region34: #{tpu_custom_call.1} parent=1 // pred_check
      _
    $region35: #{tpu_custom_call.1} parent=1 // pred_check_branch
      %76 = sbr.rel (0) target = $region37
    $region36: #{tpu_custom_call.1} parent=1 // pred_region
      %77 = dma.done [#allocation9], 128
    $region37: #{tpu_custom_call.1} parent=1 // pred_fallthru
      _
    // Predicated region
    $region38: #{tpu_custom_call.1} parent=1 // pred_check
      _
    $region39: #{tpu_custom_call.1} parent=1 // pred_check_branch
      %79 = sbr.rel (0) target = $region41
    $region40: #{tpu_custom_call.1} parent=1 // pred_region
      %80 = dma.done [#allocation9], 512
    $region41: #{tpu_custom_call.1} parent=1 // pred_fallthru
      _
    %v81 = vld [vmem:[#allocation2] sm:$0xff]
    %v82 = vld [vmem:[#allocation5] sm:$0xff]
    %v83 = vld [vmem:[#allocation7] sm:$0xff]
    %v84 = vld [vmem:[#allocation8] sm:$0xff]
    %v85 = vld [vmem:[#allocation10] sm:$0xff]
    %s86 = scalar_lea.vmem [#allocation10], 8
    %v87 = vld [vmem:[%s86] sm:$0xff]
    %v88 = vadd.f32 %v85, %v87
    %s89 = scalar_lea.vmem [#allocation10], 16
    %v90 = vld [vmem:[%s89] sm:$0xff]
    %v91 = vadd.f32 %v88, %v90
    %s92 = scalar_lea.vmem [#allocation10], 24
    %v93 = vld [vmem:[%s92] sm:$0xff]
    %v94 = vadd.f32 %v91, %v93
    %v95 = vmul.f32 %v81, %v81
    %v96 = vmul.f32 %v82, %v82
    %v97 = vmul.f32 %v83, %v83
    %v98 = vmul.f32 %v84, %v84
    %v99 = vmul.f32 %v94, %v94
    %vm100 = vcmask 261120
    %v101 = vsel %vm100, %v95, 0.0
    %102 = vadd.xlane.f32.xlu0 %v101
    %v103 = vpop.xlane.xlu0 %102
    %v104 = vsel %vm100, %v96, 0.0
    %105 = vadd.xlane.f32.xlu0 %v104
    %v106 = vpop.xlane.xlu0 %105
    %v107 = vsel %vm100, %v97, 0.0
    %108 = vadd.xlane.f32.xlu0 %v107
    %v109 = vpop.xlane.xlu0 %108
    %v110 = vsel %vm100, %v98, 0.0
    %111 = vadd.xlane.f32.xlu0 %v110
    %v112 = vpop.xlane.xlu0 %111
    %v113 = vsel %vm100, %v99, 0.0
    %114 = vadd.xlane.f32.xlu0 %v113
    %v115 = vpop.xlane.xlu0 %114
    %v116 = vmax.f32 %v103, 1e-24
    %v117 = vmax.f32 %v106, 1e-24
    %v118 = vmax.f32 %v109, 1e-24
    %v119 = vmax.f32 %v112, 1e-24
    %v120 = vmax.f32 %v115, 1e-24
    %v121 = vrsqrt.pop %v116
    %v122 = vrsqrt.pop %v117
    %v123 = vrsqrt.pop %v118
    %v124 = vrsqrt.pop %v119
    %v125 = vrsqrt.pop %v120
    %v126 = vmul.f32 %v81, %v121
    %v127 = vmul.f32 %v82, %v122
    %v128 = vmul.f32 %v83, %v123
    %v129 = vmul.f32 %v84, %v124
    %v130 = vmul.f32 %v94, %v125
    %v131 = vmul.f32 %v126, 10.0
    %v132 = vmul.f32 %v127, 10.0
    %v133 = vmul.f32 %v128, 10.0
    %v135 = vsel %vm100, %v131, 0
    %v138 = vsel %vm100, %v132, 0
    %v141 = vsel %vm100, %v133, 0
    %v144 = vsel %vm100, %v129, 0
    %v147 = vsel %vm100, %v130, 0
    %149 = vmatprep.subr.mxu0 0.0
    %150 = vmatpush1.xpose.msra.mxu0 0.0
    %151 = vmatprep.subr.mxu0 0.0
    %152 = vmatpush1.xpose.msra.mxu0 0.0
    %153 = vmatprep.subr.mxu0 0.0
    %154 = vmatpush1.xpose.msra.mxu0 0.0
    %155 = vmatprep.subr.mxu0 0.0
    %156 = vmatpush1.xpose.msra.mxu0 0.0
    %157 = vmatprep.subr.mxu0 0.0
    %158 = vmatpush1.xpose.msra.mxu0 0.0
    %159 = vmatprep.subr.mxu0 0.0
    %160 = vmatpush1.xpose.msra.mxu0 0.0
    %161 = vmatprep.subr.mxu0 0.0
    %162 = vmatpush1.xpose.msra.mxu0 0.0
    %163 = vmatprep.subr.mxu0 0.0
    %164 = vmatpush1.xpose.msra.mxu0 0.0
    %165 = vmatprep.subr.mxu0 0.0
    %166 = vmatpush1.xpose.msra.mxu0 0.0
    %167 = vmatprep.subr.mxu0 0.0
    %168 = vmatpush1.xpose.msra.mxu0 0.0
    %169 = vmatprep.subr.mxu0 0.0
    %170 = vmatpush1.xpose.msra.mxu0 0.0
    %171 = vmatprep.subr.mxu0 0.0
    %172 = vmatpush1.xpose.msra.mxu0 0.0
    %173 = vmatprep.subr.mxu0 0.0
    %174 = vmatpush1.xpose.msra.mxu0 0.0
    %175 = vmatprep.subr.mxu0 0.0
    %176 = vmatpush1.xpose.msra.mxu0 0.0
    %177 = vmatprep.subr.mxu0 0.0
    %178 = vmatpush1.xpose.msra.mxu0 %v147
    %179 = vmatprep.subr.mxu0 0.0
    %180 = vmatpush1.xpose.msra.mxu0 %v144
    %181 = vmatprep.subr.mxu0 0.0
    %182 = vmatpush2.xpose.msra.mxu0 0.0
    %183 = vmatprep.subr.mxu0 0.0
    %184 = vmatpush2.xpose.msra.mxu0 0.0
    %185 = vmatprep.subr.mxu0 0.0
    %186 = vmatpush2.xpose.msra.mxu0 0.0
    %187 = vmatprep.subr.mxu0 0.0
    %188 = vmatpush2.xpose.msra.mxu0 0.0
    %189 = vmatprep.subr.mxu0 0.0
    %190 = vmatpush2.xpose.msra.mxu0 0.0
    %191 = vmatprep.subr.mxu0 0.0
    %192 = vmatpush2.xpose.msra.mxu0 0.0
    %193 = vmatprep.subr.mxu0 0.0
    %194 = vmatpush2.xpose.msra.mxu0 0.0
    %195 = vmatprep.subr.mxu0 0.0
    %196 = vmatpush2.xpose.msra.mxu0 0.0
    %197 = vmatprep.subr.mxu0 0.0
    %198 = vmatpush2.xpose.msra.mxu0 0.0
    %199 = vmatprep.subr.mxu0 0.0
    %200 = vmatpush2.xpose.msra.mxu0 0.0
    %201 = vmatprep.subr.mxu0 0.0
    %202 = vmatpush2.xpose.msra.mxu0 0.0
    %203 = vmatprep.subr.mxu0 0.0
    %204 = vmatpush2.xpose.msra.mxu0 0.0
    %205 = vmatprep.subr.mxu0 0.0
    %206 = vmatpush2.xpose.msra.mxu0 0.0
    %207 = vmatprep.subr.mxu0 0.0
    %208 = vmatpush2.xpose.msra.mxu0 0.0
    %209 = vmatprep.subr.mxu0 0.0
    %210 = vmatpush2.xpose.msra.mxu0 0.0
    %211 = vmatprep.subr.mxu0 0.0
    %212 = vmatpush2.xpose.msra.mxu0 0.0
    %213 = vmatprep.mubr.f32.mxu0 0.0
    %214 = vmatmul.mubr.f32.gmra.mxu0 %v135
    %v215 = vpop.f32.mrf.mxu0
    %v216 = vadd.f32 0.0, %v215
    %v217 = vpop.f32.mrf.mxu0
    %218 = vmatprep.mubr.f32.mxu0 0.0
    %219 = vmatmul.mubr.f32.gmra.mxu0 %v138
    %v220 = vpop.f32.mrf.mxu0
    %v221 = vadd.f32 0.0, %v220
    %v222 = vpop.f32.mrf.mxu0
    %223 = vmatprep.mubr.f32.mxu0 0.0
    %224 = vmatmul.mubr.f32.gmra.mxu0 %v141
    %v225 = vpop.f32.mrf.mxu0
    %v226 = vadd.f32 0.0, %v225
    %v227 = vpop.f32.mrf.mxu0
    %228 = vdwg.mxu0
    %vm229 = vcmask 130048
    %v230 = vsel %vm229, %v216, -inf
    %v231 = vsel %vm229, %v221, -inf
    %v232 = vsel %vm229, %v226, -inf
    %v233 = vmax.f32 %v230, %v231
    %v234 = vmax.f32 %v233, %v232
    %235 = vmax.xlane.f32.xlu0 %v234
    %v236 = vpop.xlane.xlu0 %235
    %v237 = vrot.slane %v236, 4
    %v238 = vmax.f32 %v236, %v237
    %v239 = vrot.slane %v238, 2
    %v240 = vmax.f32 %v238, %v239
    %v241 = vrot.slane %v240, 1
    %v242 = vmax.f32 %v240, %v241
    %s243 = vtos %v242
    %v244 = vstv %s243
    %v245 = vsub.f32 %v216, %v244
    %v246 = vsub.f32 %v221, %v244
    %v247 = vsub.f32 %v226, %v244
    %v248 = vmul.f32 %v245, 1.442695
    %v249 = vpow.pop %v248
    %v250 = vmul.f32 %v246, 1.442695
    %v251 = vpow.pop %v250
    %v252 = vmul.f32 %v247, 1.442695
    %v253 = vpow.pop %v252
    %v254 = vlaneseq
    %v255 = vand.u32 %v254, 127
    %vm256 = vcmp.lt.s32.totalorder %v255, 8
    %v257 = vsel %vm256, %v249, 0.0
    %v258 = vsel %vm256, %v251, 0.0
    %v259 = vsel %vm256, %v253, 0.0
    %v260 = vsel %vm229, %v257, 0.0
    %261 = vadd.xlane.f32.xlu0 %v260
    %v262 = vpop.xlane.xlu0 %261
    %v263 = vsel %vm229, %v258, 0.0
    %264 = vadd.xlane.f32.xlu0 %v263
    %v265 = vpop.xlane.xlu0 %264
    %v266 = vsel %vm229, %v259, 0.0
    %267 = vadd.xlane.f32.xlu0 %v266
    %v268 = vpop.xlane.xlu0 %267
    %v269 = vsel %vm256, 0.0, %v249
    %v270 = vsel %vm256, 0.0, %v251
    %v271 = vsel %vm256, 0.0, %v253
    %v272 = vsel %vm229, %v269, 0.0
    %273 = vadd.xlane.f32.xlu0 %v272
    %v274 = vpop.xlane.xlu0 %273
    %v275 = vsel %vm229, %v270, 0.0
    %276 = vadd.xlane.f32.xlu0 %v275
    %v277 = vpop.xlane.xlu0 %276
    %v278 = vsel %vm229, %v271, 0.0
    %279 = vadd.xlane.f32.xlu0 %v278
    %v280 = vpop.xlane.xlu0 %279
    %v281 = vlog2.pop %v262
    %v282 = vmul.f32 %v281, 0.6931472
    %v283 = vlog2.pop %v265
    %v284 = vmul.f32 %v283, 0.6931472
    %v285 = vlog2.pop %v268
    %v286 = vmul.f32 %v285, 0.6931472
    %v287 = vadd.f32 %v244, %v282
    %v288 = vadd.f32 %v244, %v284
    %v289 = vadd.f32 %v244, %v286
    %v290 = vlog2.pop %v274
    %v291 = vmul.f32 %v290, 0.6931472
    %v292 = vlog2.pop %v277
    %v293 = vmul.f32 %v292, 0.6931472
    %v294 = vlog2.pop %v280
    %v295 = vmul.f32 %v294, 0.6931472
    %v296 = vadd.f32 %v244, %v291
    %v297 = vadd.f32 %v244, %v293
    %v298 = vadd.f32 %v244, %v295
    %v299 = vmul.f32 %v131, %v129
    %v300 = vmul.f32 %v132, %v129
    %v301 = vmul.f32 %v133, %v129
    %v302 = vsel %vm100, %v299, 0.0
    %303 = vadd.xlane.f32.xlu0 %v302
    %v304 = vpop.xlane.xlu0 %303
    %v305 = vsel %vm100, %v300, 0.0
    %306 = vadd.xlane.f32.xlu0 %v305
    %v307 = vpop.xlane.xlu0 %306
    %v308 = vsel %vm100, %v301, 0.0
    %309 = vadd.xlane.f32.xlu0 %v308
    %v310 = vpop.xlane.xlu0 %309
    %v311 = vmul.f32 %v131, %v130
    %v312 = vmul.f32 %v132, %v130
    %v313 = vmul.f32 %v133, %v130
    %v314 = vsel %vm100, %v311, 0.0
    %315 = vadd.xlane.f32.xlu0 %v314
    %v316 = vpop.xlane.xlu0 %315
    %v317 = vsel %vm100, %v312, 0.0
    %318 = vadd.xlane.f32.xlu0 %v317
    %v319 = vpop.xlane.xlu0 %318
    %v320 = vsel %vm100, %v313, 0.0
    %321 = vadd.xlane.f32.xlu0 %v320
    %v322 = vpop.xlane.xlu0 %321
    %vm323 = vcmask 7168
    %v324 = vsel %vm323, %v287, 0.0
    %325 = vadd.xlane.f32.xlu0 %v324
    %v326 = vpop.xlane.xlu0 %325
    %v327 = vrot.slane %v326, 4
    %v328 = vadd.f32 %v326, %v327
    %v329 = vrot.slane %v328, 2
    %v330 = vadd.f32 %v328, %v329
    %v331 = vrot.slane %v330, 1
    %v332 = vadd.f32 %v330, %v331
    %s333 = vtos %v332
    %v334 = vsel %vm323, %v296, 0.0
    %335 = vadd.xlane.f32.xlu0 %v334
    %v336 = vpop.xlane.xlu0 %335
    %v337 = vrot.slane %v336, 4
    %v338 = vadd.f32 %v336, %v337
    %v339 = vrot.slane %v338, 2
    %v340 = vadd.f32 %v338, %v339
    %v341 = vrot.slane %v340, 1
    %v342 = vadd.f32 %v340, %v341
    %s343 = vtos %v342
    %v344 = vsel %vm229, %v249, 0.0
    %v345 = vrot.slane %v344, 4
    %v346 = vadd.f32 %v344, %v345
    %v347 = vrot.slane %v346, 2
    %v348 = vadd.f32 %v346, %v347
    %v349 = vrot.slane %v348, 1
    %v350 = vadd.f32 %v348, %v349
    %v351 = vlog2.pop %v350
    %v352 = vmul.f32 %v351, 0.6931472
    %v353 = vadd.f32 %v244, %v352
    %v354 = vsel %vm256, %v353, 0.0
    %vm355 = vcmask 122880
    %v356 = vsel %vm355, %v354, 0.0
    %357 = vadd.xlane.f32.xlu0 %v356
    %v358 = vpop.xlane.xlu0 %357
    %v359 = vrot.slane %v358, 4
    %v360 = vadd.f32 %v358, %v359
    %v361 = vrot.slane %v360, 2
    %v362 = vadd.f32 %v360, %v361
    %v363 = vrot.slane %v362, 1
    %v364 = vadd.f32 %v362, %v363
    %s365 = vtos %v364
    %v366 = vsel %vm256, 0.0, %v353
    %v367 = vsel %vm355, %v366, 0.0
    %368 = vadd.xlane.f32.xlu0 %v367
    %v369 = vpop.xlane.xlu0 %368
    %v370 = vrot.slane %v369, 4
    %v371 = vadd.f32 %v369, %v370
    %v372 = vrot.slane %v371, 2
    %v373 = vadd.f32 %v371, %v372
    %v374 = vrot.slane %v373, 1
    %v375 = vadd.f32 %v373, %v374
    %s376 = vtos %v375
    %v377 = vsel %vm323, %v304, 0.0
    %378 = vadd.xlane.f32.xlu0 %v377
    %v379 = vpop.xlane.xlu0 %378
    %v380 = vrot.slane %v379, 4
    %v381 = vadd.f32 %v379, %v380
    %v382 = vrot.slane %v381, 2
    %v383 = vadd.f32 %v381, %v382
    %v384 = vrot.slane %v383, 1
    %v385 = vadd.f32 %v383, %v384
    %s386 = vtos %v385
    %v387 = vsel %vm323, %v316, 0.0
    %388 = vadd.xlane.f32.xlu0 %v387
    %v389 = vpop.xlane.xlu0 %388
    %v390 = vrot.slane %v389, 4
    %v391 = vadd.f32 %v389, %v390
    %v392 = vrot.slane %v391, 2
    %v393 = vadd.f32 %v391, %v392
    %v394 = vrot.slane %v393, 1
    %v395 = vadd.f32 %v393, %v394
    %s396 = vtos %v395
    %s397 = sadd.f32 %s333, %s365
    %s398 = smul.f32 %s386, 2.0
    %s399 = ssub.f32 %s397, %s398
    %s400 = smul.f32 %s399, 0.125
    %s401 = sadd.f32 %s400, 0.0
    %s402 = sadd.f32 %s343, %s376
    %s403 = smul.f32 %s396, 2.0
    %s404 = ssub.f32 %s402, %s403
    %s405 = smul.f32 %s404, 0.125
    %s406 = sadd.f32 %s401, %s405
    %v407 = vsel %vm323, %v288, 0.0
    %408 = vadd.xlane.f32.xlu0 %v407
    %v409 = vpop.xlane.xlu0 %408
    %v410 = vrot.slane %v409, 4
    %v411 = vadd.f32 %v409, %v410
    %v412 = vrot.slane %v411, 2
    %v413 = vadd.f32 %v411, %v412
    %v414 = vrot.slane %v413, 1
    %v415 = vadd.f32 %v413, %v414
    %s416 = vtos %v415
    %v417 = vsel %vm323, %v297, 0.0
    %418 = vadd.xlane.f32.xlu0 %v417
    %v419 = vpop.xlane.xlu0 %418
    %v420 = vrot.slane %v419, 4
    %v421 = vadd.f32 %v419, %v420
    %v422 = vrot.slane %v421, 2
    %v423 = vadd.f32 %v421, %v422
    %v424 = vrot.slane %v423, 1
    %v425 = vadd.f32 %v423, %v424
    %s426 = vtos %v425
    %v427 = vsel %vm229, %v251, 0.0
    %v428 = vrot.slane %v427, 4
    %v429 = vadd.f32 %v427, %v428
    %v430 = vrot.slane %v429, 2
    %v431 = vadd.f32 %v429, %v430
    %v432 = vrot.slane %v431, 1
    %v433 = vadd.f32 %v431, %v432
    %v434 = vlog2.pop %v433
    %v435 = vmul.f32 %v434, 0.6931472
    %v436 = vadd.f32 %v244, %v435
    %v437 = vsel %vm256, %v436, 0.0
    %v438 = vsel %vm355, %v437, 0.0
    %439 = vadd.xlane.f32.xlu0 %v438
    %v440 = vpop.xlane.xlu0 %439
    %v441 = vrot.slane %v440, 4
    %v442 = vadd.f32 %v440, %v441
    %v443 = vrot.slane %v442, 2
    %v444 = vadd.f32 %v442, %v443
    %v445 = vrot.slane %v444, 1
    %v446 = vadd.f32 %v444, %v445
    %s447 = vtos %v446
    %v448 = vsel %vm256, 0.0, %v436
    %v449 = vsel %vm355, %v448, 0.0
    %450 = vadd.xlane.f32.xlu0 %v449
    %v451 = vpop.xlane.xlu0 %450
    %v452 = vrot.slane %v451, 4
    %v453 = vadd.f32 %v451, %v452
    %v454 = vrot.slane %v453, 2
    %v455 = vadd.f32 %v453, %v454
    %v456 = vrot.slane %v455, 1
    %v457 = vadd.f32 %v455, %v456
    %s458 = vtos %v457
    %v459 = vsel %vm323, %v307, 0.0
    %460 = vadd.xlane.f32.xlu0 %v459
    %v461 = vpop.xlane.xlu0 %460
    %v462 = vrot.slane %v461, 4
    %v463 = vadd.f32 %v461, %v462
    %v464 = vrot.slane %v463, 2
    %v465 = vadd.f32 %v463, %v464
    %v466 = vrot.slane %v465, 1
    %v467 = vadd.f32 %v465, %v466
    %s468 = vtos %v467
    %v469 = vsel %vm323, %v319, 0.0
    %470 = vadd.xlane.f32.xlu0 %v469
    %v471 = vpop.xlane.xlu0 %470
    %v472 = vrot.slane %v471, 4
    %v473 = vadd.f32 %v471, %v472
    %v474 = vrot.slane %v473, 2
    %v475 = vadd.f32 %v473, %v474
    %v476 = vrot.slane %v475, 1
    %v477 = vadd.f32 %v475, %v476
    %s478 = vtos %v477
    %s479 = sadd.f32 %s416, %s447
    %s480 = smul.f32 %s468, 2.0
    %s481 = ssub.f32 %s479, %s480
    %s482 = smul.f32 %s481, 0.125
    %s483 = sadd.f32 %s406, %s482
    %s484 = sadd.f32 %s426, %s458
    %s485 = smul.f32 %s478, 2.0
    %s486 = ssub.f32 %s484, %s485
    %s487 = smul.f32 %s486, 0.125
    %s488 = sadd.f32 %s483, %s487
    %v489 = vsel %vm323, %v289, 0.0
    %490 = vadd.xlane.f32.xlu0 %v489
    %v491 = vpop.xlane.xlu0 %490
    %v492 = vrot.slane %v491, 4
    %v493 = vadd.f32 %v491, %v492
    %v494 = vrot.slane %v493, 2
    %v495 = vadd.f32 %v493, %v494
    %v496 = vrot.slane %v495, 1
    %v497 = vadd.f32 %v495, %v496
    %s498 = vtos %v497
    %v499 = vsel %vm323, %v298, 0.0
    %500 = vadd.xlane.f32.xlu0 %v499
    %v501 = vpop.xlane.xlu0 %500
    %v502 = vrot.slane %v501, 4
    %v503 = vadd.f32 %v501, %v502
    %v504 = vrot.slane %v503, 2
    %v505 = vadd.f32 %v503, %v504
    %v506 = vrot.slane %v505, 1
    %v507 = vadd.f32 %v505, %v506
    %s508 = vtos %v507
    %v509 = vsel %vm229, %v253, 0.0
    %v510 = vrot.slane %v509, 4
    %v511 = vadd.f32 %v509, %v510
    %v512 = vrot.slane %v511, 2
    %v513 = vadd.f32 %v511, %v512
    %v514 = vrot.slane %v513, 1
    %v515 = vadd.f32 %v513, %v514
    %v516 = vlog2.pop %v515
    %v517 = vmul.f32 %v516, 0.6931472
    %v518 = vadd.f32 %v244, %v517
    %v519 = vsel %vm256, %v518, 0.0
    %v520 = vsel %vm355, %v519, 0.0
    %521 = vadd.xlane.f32.xlu0 %v520
    %v522 = vpop.xlane.xlu0 %521
    %v523 = vrot.slane %v522, 4
    %v524 = vadd.f32 %v522, %v523
    %v525 = vrot.slane %v524, 2
    %v526 = vadd.f32 %v524, %v525
    %v527 = vrot.slane %v526, 1
    %v528 = vadd.f32 %v526, %v527
    %s529 = vtos %v528
    %v530 = vsel %vm256, 0.0, %v518
    %v531 = vsel %vm355, %v530, 0.0
    %532 = vadd.xlane.f32.xlu0 %v531
    %v533 = vpop.xlane.xlu0 %532
    %v534 = vrot.slane %v533, 4
    %v535 = vadd.f32 %v533, %v534
    %v536 = vrot.slane %v535, 2
    %v537 = vadd.f32 %v535, %v536
    %v538 = vrot.slane %v537, 1
    %v539 = vadd.f32 %v537, %v538
    %s540 = vtos %v539
    %v541 = vsel %vm323, %v310, 0.0
    %542 = vadd.xlane.f32.xlu0 %v541
    %v543 = vpop.xlane.xlu0 %542
    %v544 = vrot.slane %v543, 4
    %v545 = vadd.f32 %v543, %v544
    %v546 = vrot.slane %v545, 2
    %v547 = vadd.f32 %v545, %v546
    %v548 = vrot.slane %v547, 1
    %v549 = vadd.f32 %v547, %v548
    %s550 = vtos %v549
    %v551 = vsel %vm323, %v322, 0.0
    %552 = vadd.xlane.f32.xlu0 %v551
    %v553 = vpop.xlane.xlu0 %552
    %v554 = vrot.slane %v553, 4
    %v555 = vadd.f32 %v553, %v554
    %v556 = vrot.slane %v555, 2
    %v557 = vadd.f32 %v555, %v556
    %v558 = vrot.slane %v557, 1
    %v559 = vadd.f32 %v557, %v558
    %s560 = vtos %v559
    %s561 = sadd.f32 %s498, %s529
    %s562 = smul.f32 %s550, 2.0
    %s563 = ssub.f32 %s561, %s562
    %s564 = smul.f32 %s563, 0.125
    %s565 = sadd.f32 %s488, %s564
    %s566 = sadd.f32 %s508, %s540
    %s567 = smul.f32 %s560, 2.0
    %s568 = ssub.f32 %s566, %s567
    %s569 = smul.f32 %s568, 0.125
    %s570 = sadd.f32 %s565, %s569
    %s571 = scalar_lea.smem [#allocation11], 0
    %572 = sst [smem:[%s571]] %s570
    // Predicated region
    $region42: #{tpu_custom_call.1} parent=1 // pred_check
      _
    $region43: #{tpu_custom_call.1} parent=1 // pred_check_branch
      %574 = sbr.rel (0) target = $region45
    $region44: #{tpu_custom_call.1} parent=1 // pred_region
      %s576 = ssub.s32 16, 16
      %577 = vsyncadd [#allocation4], %s576
      %580 = dma.smem_to_hbm [#allocation11], 16, %s5, [#allocation4]
    $region45: #{tpu_custom_call.1} parent=1 // pred_fallthru
      _
    // Predicated region
    $region46: #{tpu_custom_call.1} parent=1 // pred_check
      _
    $region47: #{tpu_custom_call.1} parent=1 // pred_check_branch
      %582 = sbr.rel (0) target = $region49
    $region48: #{tpu_custom_call.1} parent=1 // pred_region
      %583 = dma.done [#allocation4], 16
    $region49: #{tpu_custom_call.1} parent=1 // pred_fallthru
      _
    %584 = sfence
    %585 = vsyncpa [#allocation3], 1
    %586 = vsyncpa [#allocation6], 1
    %587 = vsyncpa [#allocation9], 1
    %588 = vsyncpa [#allocation4], 1

</llo_original>
